<compile_context>
chip_gen: v7x
topology: tpu7x:2x2x1
jax: 0.10.0
libtpu: 0.0.40
codegen_flags: <defaults>
</compile_context>

<pallas_src>
import jax
import jax.numpy as jnp
from jax import lax
from jax.experimental import pallas as pl
from jax.experimental.pallas import tpu as pltpu


# -----------------------------------------------------------------------------
# Stage 1: fused input projection  gi = X @ W_ih + b_ih   (gates packed r|z|n)
# -----------------------------------------------------------------------------
def _input_proj_kernel(x_ref, w_ih_ref, b_ih_ref, gi_ref):
    gi_ref[...] = (
        jnp.dot(x_ref[...], w_ih_ref[...], preferred_element_type=jnp.float32)
        + b_ih_ref[...])


# -----------------------------------------------------------------------------
# Stage 2: GRU recurrence only (time-major), chunked over time.
# -----------------------------------------------------------------------------
def _gru_recurrence_kernel(gi_ref,       # (Tt, B, 3H) packed input projections
                           h0_ref,       # (B, H)      initial hidden state
                           w_hh_ref,     # (H, 3H)     fused recurrent weights
                           b_hh_ref,     # (1, 3H)     fused recurrent bias
                           hs_ref,       # (Tt, B, H)  all hidden states (out)
                           h_out_ref,    # (B, H)      final hidden state (out)
                           h_scratch):   # VMEM (B, H) persistent carry
    Bn, Hn = h0_ref.shape
    Tt = hs_ref.shape[0]

    @pl.when(pl.program_id(0) == 0)
    def _():
        h_scratch[...] = h0_ref[...]

    w_hh = w_hh_ref[...]                                          # (H, 3H)
    # Hoist the bias broadcast out of the loop (broadcast_in_dim is not CSE'd).
    b_hh = jnp.broadcast_to(b_hh_ref[...], (Bn, 3 * Hn))

    def step(i, h):
        gi = gi_ref[i]                                            # (B, 3H)
        # One fused MXU push per timestep instead of three per-gate matmuls.
        gh = jnp.dot(h, w_hh, preferred_element_type=jnp.float32) + b_hh
        # PyTorch GRU gate order r, z, n; b_hn stays inside the r* product.
        r = jax.nn.sigmoid(gi[:, :Hn] + gh[:, :Hn])
        z = jax.nn.sigmoid(gi[:, Hn:2 * Hn] + gh[:, Hn:2 * Hn])
        n = jnp.tanh(gi[:, 2 * Hn:] + r * gh[:, 2 * Hn:])
        h = (1.0 - z) * n + z * h
        hs_ref[i] = h                                             # dyn. leading-dim store
        return h

    # Bounded live ranges + LLO visibility (vs. a fully unrolled Python for).
    h = lax.fori_loop(0, Tt, step, h_scratch[...], unroll=min(Tt, 8))

    h_scratch[...] = h
    h_out_ref[...] = h      # written every chunk (robust to revisit semantics)


# -----------------------------------------------------------------------------
# Stage 3: Luong 'dot' attention + attention_dense, fully parallel over
# (batch, time-tile).  Consumes all hidden states at once.
# -----------------------------------------------------------------------------
def _attention_dense_kernel(hs_ref,      # (1, Ta, H)
                            enc_ref,     # (1, S, H)
                            mask_ref,    # (1, 1, S)
                            w_dh_ref,    # (H, H)  attention_dense, h part
                            w_dc_ref,    # (H, H)  attention_dense, ctx part
                            b_d_ref,     # (1, H)
                            out_ref,     # (1, Ta, H)
                            probs_ref):  # (1, 1, S)  last-step attention probs
    hs = hs_ref[0]                                                # (Ta, H)
    enc = enc_ref[0]                                              # (S, H)
    mask = mask_ref[0]                                            # (1, S)

    # energy = hs @ enc^T, contracting H without materializing a transpose.
    energy = lax.dot_general(hs, enc, (((1,), (1,)), ((), ())),
                             preferred_element_type=jnp.float32)  # (Ta, S)
    # softmax -> mask -> renorm fused into one normalization pass
    # (identical to the PyTorch sequence for 0/1 masks).  Exact division: the
    # probabilities are a returned output.
    e = jnp.exp(energy - jnp.max(energy, axis=-1, keepdims=True)) * mask
    p = e / jnp.sum(e, axis=-1, keepdims=True)                    # (Ta, S)
    ctx = jnp.dot(p, enc, preferred_element_type=jnp.float32)     # (Ta, H)

    # attention_dense([h ; ctx]) without a lane-axis concat (weight pre-split).
    out_ref[0] = (
        jnp.dot(hs, w_dh_ref[...], preferred_element_type=jnp.float32)
        + jnp.dot(ctx, w_dc_ref[...], preferred_element_type=jnp.float32)
        + b_d_ref[...])

    # Last decode step of this tile; the last time-tile's write is what the
    # module returns.  Written unconditionally (cheap, robust).
    Ta = hs.shape[0]
    probs_ref[0] = p[Ta - 1:Ta, :]


# -----------------------------------------------------------------------------
# Chunk-size helpers
# -----------------------------------------------------------------------------
def _aligned_chunk(n, cap):
    """Chunk for a second-minor (sublane) block dim: whole n if n <= cap,
    else the largest divisor of n that is a multiple of 8, else n."""
    if n <= cap:
        return n
    for c in range(cap, 7, -1):
        if n % c == 0 and c % 8 == 0:
            return c
    return n


def _leading_chunk(n, cap):
    """Chunk for a leading (untiled) block dim: any divisor of n up to cap."""
    if n <= cap:
        return n
    for c in range(cap, 0, -1):
        if n % c == 0:
            return c
    return n


# -----------------------------------------------------------------------------
# Wrapper
# -----------------------------------------------------------------------------
def attentional_rnn_decoder(input_embeddings, params,
                            hidden_states=None, encoder_outputs=None,
                            encoder_masks=None):
    B, T, E = input_embeddings.shape
    _, S, C = encoder_outputs.shape
    H = params['w_hh_T'].shape[0]
    assert C == H, "Luong 'dot' alignment requires context_size == hidden_size"

    f32 = jnp.float32
    if hidden_states is None:
        h0 = jnp.zeros((B, H), f32)
    else:
        h0 = hidden_states.reshape(B, H).astype(f32)
    if encoder_masks is None:
        encoder_masks = jnp.ones((B, S), f32)
    mask3 = encoder_masks.astype(f32).reshape(B, 1, S)
    enc = encoder_outputs.astype(f32)

    # One-time host-side weight preprocessing.  GRU weights stay fused (E,3H)/
    # (H,3H) so each matmul is a single MXU call; attention_dense is split so
    # the kernel never concatenates along lanes.
    w_ih = params['w_ih_T'].astype(f32)          # (E, 3H)
    w_hh = params['w_hh_T'].astype(f32)          # (H, 3H)
    b_ih = params['b_ih'].astype(f32)            # (1, 3H)
    b_hh = params['b_hh'].astype(f32)            # (1, 3H)
    w_dh = params['w_d_T'][:H, :].astype(f32)    # (H, H)
    w_dc = params['w_d_T'][H:, :].astype(f32)    # (H, H)
    b_d = params['b_d'].astype(f32)              # (1, H)

    # ---- Stage 1: fused input projection over all (T*B) rows ----------------
    # Time-major so stage 2 can index the time axis as the leading dim.
    x_tb = jnp.transpose(input_embeddings.astype(f32), (1, 0, 2)).reshape(T * B, E)
    rows = T * B
    Rb = _aligned_chunk(rows, 512)
    gi = pl.pallas_call(
        _input_proj_kernel,
        out_shape=jax.ShapeDtypeStruct((rows, 3 * H), f32),
        grid_spec=pltpu.PrefetchScalarGridSpec(
            num_scalar_prefetch=0,
            grid=(rows // Rb,),
            in_specs=[
                pl.BlockSpec((Rb, E), lambda r: (r, 0)),
                pl.BlockSpec((E, 3 * H), lambda r: (0, 0)),
                pl.BlockSpec((1, 3 * H), lambda r: (0, 0)),
            ],
            out_specs=pl.BlockSpec((Rb, 3 * H), lambda r: (r, 0)),
        ),
        compiler_params=pltpu.CompilerParams(
            dimension_semantics=("parallel",)),
    )(x_tb, w_ih, b_ih)
    gi = gi.reshape(T, B, 3 * H)                 # row-major reshape, no movement

    # ---- Stage 2: sequential GRU recurrence (time-chunked) ------------------
    Tt = _leading_chunk(T, 128)
    n_chunks = T // Tt
    hs_tb, h_last = pl.pallas_call(
        _gru_recurrence_kernel,
        out_shape=(jax.ShapeDtypeStruct((T, B, H), f32),
                   jax.ShapeDtypeStruct((B, H), f32)),
        grid_spec=pltpu.PrefetchScalarGridSpec(
            num_scalar_prefetch=0,
            grid=(n_chunks,),
            in_specs=[
                pl.BlockSpec((Tt, B, 3 * H), lambda c: (c, 0, 0)),   # gi
                pl.BlockSpec((B, H), lambda c: (0, 0)),              # h0
                pl.BlockSpec((H, 3 * H), lambda c: (0, 0)),          # w_hh
                pl.BlockSpec((1, 3 * H), lambda c: (0, 0)),          # b_hh
            ],
            out_specs=[
                pl.BlockSpec((Tt, B, H), lambda c: (c, 0, 0)),       # hs
                pl.BlockSpec((B, H), lambda c: (0, 0)),              # h_last
            ],
            scratch_shapes=[pltpu.VMEM((B, H), f32)],
        ),
        compiler_params=pltpu.CompilerParams(
            dimension_semantics=("arbitrary",)),    # true recurrence
    )(gi, h0, w_hh, b_hh)

    # ---- Stage 3: parallel attention + attention_dense ----------------------
    hs = jnp.transpose(hs_tb, (1, 0, 2))        # (B, T, H) batch-major for MXU rows
    Ta = _aligned_chunk(T, 256)
    nTa = T // Ta
    outputs, probs = pl.pallas_call(
        _attention_dense_kernel,
        out_shape=(jax.ShapeDtypeStruct((B, T, H), f32),
                   jax.ShapeDtypeStruct((B, 1, S), f32)),
        grid_spec=pltpu.PrefetchScalarGridSpec(
            num_scalar_prefetch=0,
            grid=(B, nTa),
            in_specs=[
                pl.BlockSpec((1, Ta, H), lambda b, j: (b, j, 0)),    # hs
                pl.BlockSpec((1, S, H), lambda b, j: (b, 0, 0)),     # enc
                pl.BlockSpec((1, 1, S), lambda b, j: (b, 0, 0)),     # mask
                pl.BlockSpec((H, H), lambda b, j: (0, 0)),           # w_dh
                pl.BlockSpec((H, H), lambda b, j: (0, 0)),           # w_dc
                pl.BlockSpec((1, H), lambda b, j: (0, 0)),           # b_d
            ],
            out_specs=[
                pl.BlockSpec((1, Ta, H), lambda b, j: (b, j, 0)),    # outputs
                pl.BlockSpec((1, 1, S), lambda b, j: (b, 0, 0)),     # probs
            ],
        ),
        compiler_params=pltpu.CompilerParams(
            dimension_semantics=("parallel", "arbitrary")),
    )(hs, enc, mask3, w_dh, w_dc, b_d)

    hidden = h_last[None, :, :]                  # (num_layers=1, B, H)
    return outputs, hidden, probs                # probs already (B, 1, S)


# -----------------------------------------------------------------------------
# Pure-JAX reference (mirrors the PyTorch forward) for a correctness check.
# -----------------------------------------------------------------------------
def _reference(input_embeddings, params, encoder_outputs, encoder_masks):
    B, T, E = input_embeddings.shape
    H = params['w_hh_T'].shape[0]
    h = jnp.zeros((B, H), jnp.float32)
    outs = []
    p = None
    for t in range(T):
        x = input_embeddings[:, t, :]
        gi = x @ params['w_ih_T'] + params['b_ih']
        gh = h @ params['w_hh_T'] + params['b_hh']
        r = jax.nn.sigmoid(gi[:, :H] + gh[:, :H])
        z = jax.nn.sigmoid(gi[:, H:2 * H] + gh[:, H:2 * H])
        n = jnp.tanh(gi[:, 2 * H:] + r * gh[:, 2 * H:])
        h = (1.0 - z) * n + z * h
        energy = jnp.einsum('bh,bsh->bs', h, encoder_outputs)
        p = jax.nn.softmax(energy, axis=-1) * encoder_masks
        p = p / jnp.sum(p, axis=-1, keepdims=True)
        ctx = jnp.einsum('bs,bsh->bh', p, encoder_outputs)
        out = jnp.concatenate([h, ctx], axis=-1) @ params['w_d_T'] + params['b_d']
        outs.append(out)
    return jnp.stack(outs, axis=1), h[None], p[:, None, :]


# -----------------------------------------------------------------------------
if __name__ == "__main__":
    # Small shapes consistent with the module.
    B, T, S = 2, 8, 8          # batch, decode length, encoder (source) length
    E, H = 16, 32              # embedding_size, hidden_size (== context_size)

    key = jax.random.PRNGKey(0)
    ks = jax.random.split(key, 10)
    scale = 1.0 / jnp.sqrt(H)

    # Deterministic synthetic parameters in the combined PyTorch layout.
    params = {
        'w_ih_T': jax.random.uniform(ks[0], (E, 3 * H), jnp.float32, -scale, scale),
        'w_hh_T': jax.random.uniform(ks[1], (H, 3 * H), jnp.float32, -scale, scale),
        'b_ih':   jax.random.uniform(ks[2], (1, 3 * H), jnp.float32, -scale, scale),
        'b_hh':   jax.random.uniform(ks[3], (1, 3 * H), jnp.float32, -scale, scale),
        'w_d_T':  jax.random.uniform(ks[4], (2 * H, H), jnp.float32, -scale, scale),
        'b_d':    jax.random.uniform(ks[5], (1, H), jnp.float32, -scale, scale),
    }

    input_embeddings = jax.random.normal(ks[6], (B, T, E), jnp.float32)
    encoder_outputs = jax.random.normal(ks[7], (B, S, H), jnp.float32)
    encoder_masks = jnp.ones((B, S), jnp.float32)   # forward() default when None

    outputs, hidden, probs = attentional_rnn_decoder(
        input_embeddings, params,
        hidden_states=None,
        encoder_outputs=encoder_outputs,
        encoder_masks=encoder_masks,
    )
    jax.block_until_ready((outputs, hidden, probs))

    ref_out, ref_h, ref_p = _reference(input_embeddings, params,
                                       encoder_outputs, encoder_masks)
    assert outputs.shape == (B, T, H)
    assert hidden.shape == (1, B, H)
    assert probs.shape == (B, 1, S)
    assert jnp.allclose(outputs, ref_out, atol=1e-3, rtol=1e-3), "outputs mismatch"
    assert jnp.allclose(hidden, ref_h, atol=1e-3, rtol=1e-3), "hidden mismatch"
    assert jnp.allclose(probs, ref_p, atol=1e-3, rtol=1e-3), "probs mismatch"

    print("KERNEL_OK")
</pallas_src>

<mosaic_0001>
module attributes {stable_mosaic.version = 11 : i64} {
  func.func @_input_proj_kernel(%arg0: i32, %arg1: memref<16x16xf32, #tpu.memory_space<vmem>>, %arg2: memref<16x96xf32, #tpu.memory_space<vmem>>, %arg3: memref<1x96xf32, #tpu.memory_space<vmem>>, %arg4: memref<16x96xf32, #tpu.memory_space<vmem>>) attributes {dimension_semantics = [#tpu.dimension_semantics<parallel>], iteration_bounds = array<i64: 1>, scalar_prefetch = 0 : i64, scratch_operands = 0 : i64, tpu.core_type = #tpu.core_type<tc>, window_params = [{transform_indices = @transform_0, window_bounds = array<i64: 16, 16>}, {pipeline_mode = #tpu.pipeline_mode<synchronous>, transform_indices = @transform_1, window_bounds = array<i64: 16, 96>}, {pipeline_mode = #tpu.pipeline_mode<synchronous>, transform_indices = @transform_2, window_bounds = array<i64: 1, 96>}, {transform_indices = @transform_3, window_bounds = array<i64: 16, 96>}]} {
    %c0 = arith.constant 0 : index
    %c0_0 = arith.constant 0 : index
    %0 = vector.load %arg1[%c0, %c0_0] : memref<16x16xf32, #tpu.memory_space<vmem>>, vector<16x16xf32>
    %c0_1 = arith.constant 0 : index
    %c0_2 = arith.constant 0 : index
    %1 = vector.load %arg2[%c0_1, %c0_2] : memref<16x96xf32, #tpu.memory_space<vmem>>, vector<16x96xf32>
    %cst = arith.constant dense<0.000000e+00> : vector<16x96xf32>
    %2 = tpu.matmul %0, %1, %cst {dimension_numbers = #tpu.dot_dimension_numbers<[1], [0], [0], [1], [0, 0, 1, 1], [], []>} : vector<16x16xf32>, vector<16x96xf32>, vector<16x96xf32> -> vector<16x96xf32>
    %c0_3 = arith.constant 0 : index
    %c0_4 = arith.constant 0 : index
    %3 = vector.load %arg3[%c0_3, %c0_4] : memref<1x96xf32, #tpu.memory_space<vmem>>, vector<1x96xf32>
    %4 = vector.broadcast %3 : vector<1x96xf32> to vector<16x96xf32>
    %5 = arith.addf %2, %4 : vector<16x96xf32>
    %c0_5 = arith.constant 0 : index
    %c0_6 = arith.constant 0 : index
    %6 = vector.load %arg4[%c0_5, %c0_6] : memref<16x96xf32, #tpu.memory_space<vmem>>, vector<16x96xf32>
    tpu.vector_store %arg4[%c0_5, %c0_6], %5 {strides = array<i32>} : memref<16x96xf32, #tpu.memory_space<vmem>>, vector<16x96xf32>,
    return
  }
  func.func @transform_0(%arg0: i32) -> (i32, i32) {
    %c0_i32 = arith.constant 0 : i32
    %c0_i32_0 = arith.constant 0 : i32
    return %arg0, %c0_i32 : i32, i32
  }
  func.func @transform_1(%arg0: i32) -> (i32, i32) {
    %c0_i32 = arith.constant 0 : i32
    %c0_i32_0 = arith.constant 0 : i32
    %c0_i32_1 = arith.constant 0 : i32
    return %c0_i32, %c0_i32_0 : i32, i32
  }
  func.func @transform_2(%arg0: i32) -> (i32, i32) {
    %c0_i32 = arith.constant 0 : i32
    %c0_i32_0 = arith.constant 0 : i32
    %c0_i32_1 = arith.constant 0 : i32
    return %c0_i32, %c0_i32_0 : i32, i32
  }
  func.func @transform_3(%arg0: i32) -> (i32, i32) {
    %c0_i32 = arith.constant 0 : i32
    %c0_i32_0 = arith.constant 0 : i32
    return %arg0, %c0_i32 : i32, i32
  }
}

</mosaic_0001>

<llo_original>
// kernel: tpu_custom_call.1
$region0: #{tpu_custom_call.1}
  #allocation0 [shape = 'u32[]', space=smem, size = 0x4, offset = 0x4, fixed_abs, tag = 'smem constant byte address 0x4 - core index']
  #allocation1 [shape = 'u32[144,128]{1,0:T(1,128)}', space=vmem, size = 0x12000, scoped, tag = 'internal scratch']
  %s0 = inlined_call_operand.hbm [shape: f32[16,16], index: 0, kind: input, shape index: {}]
  %s1 = inlined_call_operand.hbm [shape: f32[16,96], index: 1, kind: input, shape index: {}]
  %s2 = inlined_call_operand.vmem [shape: f32[1,96], index: 2, kind: input, shape index: {}]
  %s3 = inlined_call_operand.hbm [shape: f32[16,96], index: 3, kind: output, shape index: {}]
  %s4 = sld [smem:[#allocation0]]
  $region30: #{tpu_custom_call.1} parent=0
    _
  %s6 = ssub.s32 1, %s4
  %s7 = scalar_select 0, %s6, %s4
  $region1: #{tpu_custom_call.1} parent=0
    #allocation2 [shape = 'u8[8192]{0}', space=vmem, size = 0x2000, scoped, tag = 'input window, operand 0, single buffered']
    #allocation3 [shape = 's32[1]{0}', space=sflag, size = 0x4, scoped, tag = 'scoped memory for tpu_custom_call.1']
    #allocation4 [shape = 's32[1]{0}', space=sflag, size = 0x4, scoped, tag = 'scoped memory for tpu_custom_call.1']
    #allocation5 [shape = 'u8[8192]{0}', space=vmem, size = 0x2000, scoped, tag = 'input window, operand 1, single buffered']
    #allocation6 [shape = 's32[1]{0}', space=sflag, size = 0x4, scoped, tag = 'scoped memory for tpu_custom_call.1']
    #allocation7 [shape = 'u8[8192]{0}', space=vmem, size = 0x2000, scoped, tag = 'output window, operand 0, single buffered']
    %8 = vsyncpa [#allocation3], 0
    %9 = vsyncpa [#allocation6], 0
    %10 = vsyncpa [#allocation4], 0
    // Predicated region
    $region2: #{tpu_custom_call.1} parent=1 // pred_check
      _
    $region3: #{tpu_custom_call.1} parent=1 // pred_check_branch
      %12 = sbr.rel (0) target = $region5
    $region4: #{tpu_custom_call.1} parent=1 // pred_region
      %s14 = ssub.s32 256, 256
      %15 = vsyncadd [#allocation3], %s14
      %s16 = sshll.u32 [#allocation2], 4
      %s17 = int_to_ptr.vmem [resolvable:$true] %s16
      %22 = dma.hbm_to_vmem [thread:$0]  %s0, 256, %s17, [#allocation3], 128, 128, 8
    $region5: #{tpu_custom_call.1} parent=1 // pred_fallthru
      _
    // Predicated region
    $region6: #{tpu_custom_call.1} parent=1 // pred_check
      _
    $region7: #{tpu_custom_call.1} parent=1 // pred_check_branch
      %24 = sbr.rel (0) target = $region9
    $region8: #{tpu_custom_call.1} parent=1 // pred_region
      %s26 = ssub.s32 256, 256
      %27 = vsyncadd [#allocation6], %s26
      %s28 = sshll.u32 [#allocation5], 4
      %s29 = int_to_ptr.vmem [resolvable:$true] %s28
      %34 = dma.hbm_to_vmem [thread:$0]  %s1, 256, %s29, [#allocation6], 128, 128, 8
    $region9: #{tpu_custom_call.1} parent=1 // pred_fallthru
      _
    // Predicated region
    $region10: #{tpu_custom_call.1} parent=1 // pred_check
      _
    $region11: #{tpu_custom_call.1} parent=1 // pred_check_branch
      %36 = sbr.rel (0) target = $region13
    $region12: #{tpu_custom_call.1} parent=1 // pred_region
      _
    $region13: #{tpu_custom_call.1} parent=1 // pred_fallthru
      _
    // Predicated region
    $region14: #{tpu_custom_call.1} parent=1 // pred_check
      _
    $region15: #{tpu_custom_call.1} parent=1 // pred_check_branch
      %38 = sbr.rel (0) target = $region17
    $region16: #{tpu_custom_call.1} parent=1 // pred_region
      %39 = dma.done [#allocation3], 256
    $region17: #{tpu_custom_call.1} parent=1 // pred_fallthru
      _
    // Predicated region
    $region18: #{tpu_custom_call.1} parent=1 // pred_check
      _
    $region19: #{tpu_custom_call.1} parent=1 // pred_check_branch
      %41 = sbr.rel (0) target = $region21
    $region20: #{tpu_custom_call.1} parent=1 // pred_region
      %42 = dma.done [#allocation6], 256
    $region21: #{tpu_custom_call.1} parent=1 // pred_fallthru
      _
    %v43 = vld [vmem:[#allocation2] sm:$0xff]
    %v44 = vld [vmem:[#allocation2 + $0x8] sm:$0xff]
    %v45 = vld [vmem:[#allocation5] sm:$0xff]
    %v46 = vld [vmem:[#allocation5 + $0x8] sm:$0xff]
    %v47 = vld [vmem:[%s2] sm:$0x1]
    %v49 = vlaneseq
    %v50 = vshrl.u32 %v49, 7
    %v51 = vsub.s32 0, %v50
    %v52 = vrot.slane %v47, %v51
    %vm54 = vcmask 130048
    %v56 = vsel %vm54, %v43, 0
    %v59 = vsel %vm54, %v44, 0
    %61 = vmatprep.subr.mxu0 0.0
    %62 = vmatpush1.msra.mxu0 %v45
    %63 = vmatprep.subr.mxu0 0.0
    %64 = vmatpush1.msra.mxu0 %v46
    %65 = vmatprep.subr.mxu0 0.0
    %66 = vmatpush1.msra.mxu0 0.0
    %67 = vmatprep.subr.mxu0 0.0
    %68 = vmatpush1.msra.mxu0 0.0
    %69 = vmatprep.subr.mxu0 0.0
    %70 = vmatpush1.msra.mxu0 0.0
    %71 = vmatprep.subr.mxu0 0.0
    %72 = vmatpush1.msra.mxu0 0.0
    %73 = vmatprep.subr.mxu0 0.0
    %74 = vmatpush1.msra.mxu0 0.0
    %75 = vmatprep.subr.mxu0 0.0
    %76 = vmatpush1.msra.mxu0 0.0
    %77 = vmatprep.subr.mxu0 0.0
    %78 = vmatpush1.msra.mxu0 0.0
    %79 = vmatprep.subr.mxu0 0.0
    %80 = vmatpush1.msra.mxu0 0.0
    %81 = vmatprep.subr.mxu0 0.0
    %82 = vmatpush1.msra.mxu0 0.0
    %83 = vmatprep.subr.mxu0 0.0
    %84 = vmatpush1.msra.mxu0 0.0
    %85 = vmatprep.subr.mxu0 0.0
    %86 = vmatpush1.msra.mxu0 0.0
    %87 = vmatprep.subr.mxu0 0.0
    %88 = vmatpush1.msra.mxu0 0.0
    %89 = vmatprep.subr.mxu0 0.0
    %90 = vmatpush1.msra.mxu0 0.0
    %91 = vmatprep.subr.mxu0 0.0
    %92 = vmatpush1.msra.mxu0 0.0
    %93 = vmatprep.subr.mxu0 0.0
    %94 = vmatpush1.msra.mxu0 0.0
    %95 = vmatprep.subr.mxu0 0.0
    %96 = vmatpush1.msra.mxu0 0.0
    %97 = vmatprep.subr.mxu0 0.0
    %98 = vmatpush1.msra.mxu0 0.0
    %99 = vmatprep.subr.mxu0 0.0
    %100 = vmatpush1.msra.mxu0 0.0
    %101 = vmatprep.subr.mxu0 0.0
    %102 = vmatpush1.msra.mxu0 0.0
    %103 = vmatprep.subr.mxu0 0.0
    %104 = vmatpush1.msra.mxu0 0.0
    %105 = vmatprep.subr.mxu0 0.0
    %106 = vmatpush1.msra.mxu0 0.0
    %107 = vmatprep.subr.mxu0 0.0
    %108 = vmatpush1.msra.mxu0 0.0
    %109 = vmatprep.subr.mxu0 0.0
    %110 = vmatpush1.msra.mxu0 0.0
    %111 = vmatprep.subr.mxu0 0.0
    %112 = vmatpush1.msra.mxu0 0.0
    %113 = vmatprep.subr.mxu0 0.0
    %114 = vmatpush1.msra.mxu0 0.0
    %115 = vmatprep.subr.mxu0 0.0
    %116 = vmatpush1.msra.mxu0 0.0
    %117 = vmatprep.subr.mxu0 0.0
    %118 = vmatpush1.msra.mxu0 0.0
    %119 = vmatprep.subr.mxu0 0.0
    %120 = vmatpush1.msra.mxu0 0.0
    %121 = vmatprep.subr.mxu0 0.0
    %122 = vmatpush1.msra.mxu0 0.0
    %123 = vmatprep.subr.mxu0 0.0
    %124 = vmatpush1.msra.mxu0 0.0
    %125 = vmatprep.mubr.f32.mxu0 0.0
    %126 = vmatmul.mubr.f32.gmra.mrb[0].mxu0 %v56
    %v127 = vpop.f32.mrb[0].mxu0
    %v128 = vadd.f32 %v52, %v127
    %v129 = vpop.f32.mrb[0].mxu0
    %130 = vmatprep.mubr.f32.mxu0 0.0
    %131 = vmatmul.mubr.f32.gmra.mrb[0].mxu0 %v59
    %v132 = vpop.f32.mrb[0].mxu0
    %v133 = vadd.f32 %v52, %v132
    %v134 = vpop.f32.mrb[0].mxu0
    %135 = vdwg.mxu0
    %vm136 = vcmask 785408
    %137 = vst.msk [vmem:[#allocation7] sm:$0xff] %vm136, %v128
    %138 = vst.msk [vmem:[#allocation7 + $0x8] sm:$0xff] %vm136, %v133
    // Predicated region
    $region22: #{tpu_custom_call.1} parent=1 // pred_check
      _
    $region23: #{tpu_custom_call.1} parent=1 // pred_check_branch
      %140 = sbr.rel (0) target = $region25
    $region24: #{tpu_custom_call.1} parent=1 // pred_region
      %s142 = ssub.s32 256, 256
      %143 = vsyncadd [#allocation4], %s142
      %s144 = sshll.u32 [#allocation7], 4
      %s145 = int_to_ptr.vmem [resolvable:$true] %s144
      %150 = dma.vmem_to_hbm [thread:$0]  %s145, 256, %s3, [#allocation4], 128, 128, 8
    $region25: #{tpu_custom_call.1} parent=1 // pred_fallthru
      _
    // Predicated region
    $region26: #{tpu_custom_call.1} parent=1 // pred_check
      _
    $region27: #{tpu_custom_call.1} parent=1 // pred_check_branch
      %152 = sbr.rel (0) target = $region29
    $region28: #{tpu_custom_call.1} parent=1 // pred_region
      %153 = dma.done [#allocation4], 256
    $region29: #{tpu_custom_call.1} parent=1 // pred_fallthru
      _
    %154 = vsyncpa [#allocation3], 1
    %155 = vsyncpa [#allocation6], 1
    %156 = vsyncpa [#allocation4], 1

</llo_original>
